<compile_context>
chip_gen: v6e
topology: v6e:2x2x1
jax: 0.10.0
libtpu: 0.0.40
codegen_flags: <defaults>
</compile_context>

<pallas_src>
import functools

import jax
import jax.numpy as jnp
from jax import lax
from jax.experimental import pallas as pl
from jax.experimental.pallas import tpu as pltpu

_MASK_VALUE = -1e30       # finite: avoids NaN (-inf - -inf) on fully-masked key tiles
_STAT_LANES = 128         # lane-dense running-stat width


def _round_up(x, m):
    return (x + m - 1) // m * m


def _nt_xent_lse_kernel(zq_ref, zk_ref, lse_ref, m_ref, l_ref, s_ref, *,
                        n_valid, block_q, block_k):
    """Online masked logsumexp of sim[i, :] over j != i (diag + pad masks gated)."""
    i = pl.program_id(0)          # row-tile index    ("parallel")
    k = pl.program_id(1)          # key-tile index    ("arbitrary", reduction, last)

    @pl.when(k == 0)
    def _init():
        m_ref[...] = jnp.full(m_ref.shape, _MASK_VALUE, dtype=jnp.float32)
        l_ref[...] = jnp.zeros_like(l_ref)

    # Similarity tile on the MXU: bf16 operands, f32 accumulation, contraction over
    # the last dim of both operands (no transposed VMEM copy).  The query side
    # already carries the 1/temperature scale (applied once in the wrapper).
    s_ref[...] = lax.dot_general(
        zq_ref[...], zk_ref[...],
        dimension_numbers=(((1,), (1,)), ((), ())),
        preferred_element_type=jnp.float32)                       # (bq, bk)

    # --- gated masking: only the few tiles that can contain masked entries pay. ---
    needs_diag = (i * block_q < (k + 1) * block_k) & (k * block_k < (i + 1) * block_q)
    needs_pad = (k + 1) * block_k > n_valid

    @pl.when(needs_diag)
    def _mask_diag():
        row = i * block_q + lax.broadcasted_iota(jnp.int32, (block_q, 1), 0)
        col = k * block_k + lax.broadcasted_iota(jnp.int32, (1, block_k), 1)
        s_ref[...] = jnp.where(row == col, jnp.float32(_MASK_VALUE), s_ref[...])

    @pl.when(needs_pad)
    def _mask_pad():
        col = k * block_k + lax.broadcasted_iota(jnp.int32, (1, block_k), 1)
        s_ref[...] = jnp.where(col >= n_valid, jnp.float32(_MASK_VALUE), s_ref[...])

    # --- streaming logsumexp update with lane-dense (bq, 128) stats. ---
    s = s_ref[...]                                                  # (bq, bk)
    m_prev = m_ref[...]                                             # (bq, 128)
    l_prev = l_ref[...]                                             # (bq, 128)

    m_curr = jnp.max(s, axis=-1, keepdims=True)                     # (bq, 1)
    m_next = jnp.maximum(m_prev, m_curr)                            # (bq, 128)
    alpha = jnp.exp(m_prev - m_next)                                # (bq, 128)

    repeats = block_k // _STAT_LANES                                # bk is a mult of 128
    p = jnp.exp(s - jnp.tile(m_next, (1, repeats)))                 # (bq, bk)

    m_ref[...] = m_next
    l_ref[...] = jnp.sum(p, axis=-1, keepdims=True) + alpha * l_prev

    @pl.when(k == pl.num_programs(1) - 1)
    def _finalize():
        lse_ref[...] = m_ref[...] + jnp.log(l_ref[...])             # (bq, 128), lanes equal


def nt_xent_loss(z_i, z_j, temperature, *, block_q=512, block_k=1024):
    """NT-Xent loss (world_size = 1). z_i, z_j: (B, D) -> scalar f32."""
    b, d = z_i.shape
    n = 2 * b
    inv_temp = 1.0 / float(temperature)

    z = jnp.concatenate([z_i, z_j], axis=0).astype(jnp.float32)     # (N, D)

    # L2-normalize each row once (rsqrt).  Matches CosineSimilarity's eps=1e-8 on the
    # norm product except for rows with norm < ~1e-4 (irrelevant here).
    sq = jnp.sum(z * z, axis=-1, keepdims=True)
    z_hat = z * lax.rsqrt(jnp.maximum(sq, jnp.float32(1e-16)))

    # Positive-pair similarities in O(N*D): pos[i] = cos(z_i, z_{(i+B) mod N}) / T.
    pos_half = jnp.sum(z_hat[:b] * z_hat[b:], axis=-1)              # (B,)
    pos = jnp.concatenate([pos_half, pos_half], axis=0) * inv_temp  # (N,)

    # Tile sizes: lane-dense keys (bk multiple of 128), sublane-aligned queries.
    d_pad = _round_up(d, 128)
    bq = min(block_q, _round_up(n, 8))
    bk = min(block_k, _round_up(n, 128))
    n_pad_q = _round_up(n, bq)          # query/row padding is independent of key padding
    n_pad_k = _round_up(n, bk)

    # bf16 MXU operands; 1/temperature is folded into the query copy (hoisted out of
    # the k loop).  Padded rows/cols are zero; padded key columns are masked in-kernel.
    zq = jnp.pad((z_hat * jnp.float32(inv_temp)).astype(jnp.bfloat16),
                 ((0, n_pad_q - n), (0, d_pad - d)))
    zk = jnp.pad(z_hat.astype(jnp.bfloat16),
                 ((0, n_pad_k - n), (0, d_pad - d)))

    kernel = functools.partial(_nt_xent_lse_kernel, n_valid=n, block_q=bq, block_k=bk)

    lse = pl.pallas_call(
        kernel,
        out_shape=jax.ShapeDtypeStruct((n_pad_q, _STAT_LANES), jnp.float32),
        grid_spec=pltpu.PrefetchScalarGridSpec(
            num_scalar_prefetch=0,
            grid=(n_pad_q // bq, n_pad_k // bk),            # reduction axis last
            in_specs=[
                pl.BlockSpec((bq, d_pad), lambda i, k: (i, 0)),   # pre-scaled queries
                pl.BlockSpec((bk, d_pad), lambda i, k: (k, 0)),   # keys
            ],
            out_specs=pl.BlockSpec((bq, _STAT_LANES), lambda i, k: (i, 0)),
            scratch_shapes=[
                pltpu.VMEM((bq, _STAT_LANES), jnp.float32),   # running max (lane-dense)
                pltpu.VMEM((bq, _STAT_LANES), jnp.float32),   # running sum (lane-dense)
                pltpu.VMEM((bq, bk), jnp.float32),            # s tile (gated masking)
            ]),
        compiler_params=pltpu.CompilerParams(
            dimension_semantics=("parallel", "arbitrary"),
            vmem_limit_bytes=32 * 1024 * 1024),
    )(zq, zk)

    return jnp.sum(lse[:n, 0] - pos) / jnp.float32(n)


def nt_xent_loss_ref(z_i, z_j, temperature):
    """Pure-JAX reference mirroring the PyTorch forward."""
    b = z_i.shape[0]
    z = jnp.concatenate([z_i, z_j], axis=0).astype(jnp.float32)
    n = 2 * b
    norm = jnp.linalg.norm(z, axis=-1, keepdims=True)
    sim = (z @ z.T) / jnp.maximum(norm * norm.T, 1e-8) / temperature
    idx = jnp.arange(n)
    pos = sim[idx, (idx + b) % n]
    masked = jnp.where(jnp.eye(n, dtype=bool), -jnp.inf, sim)
    lse = jax.scipy.special.logsumexp(masked, axis=-1)
    return jnp.sum(lse - pos) / n


if __name__ == "__main__":
    temperature = 0.5
    key = jax.random.PRNGKey(0)

    # bf16 MXU operands (per the performance review) bound the per-similarity error at
    # ~1e-3; both the kernel and the reference matmul run at bf16 MXU precision on TPU
    # by default, so the loss-level tolerance is set accordingly.
    TOL = 2e-3

    # Check 1: the module's natural small shape.
    batch_size, dim = 8, 32
    k1, k2 = jax.random.split(key)
    z_i = jax.random.normal(k1, (batch_size, dim), dtype=jnp.float32)
    z_j = jax.random.normal(k2, (batch_size, dim), dtype=jnp.float32)
    loss = jax.block_until_ready(nt_xent_loss(z_i, z_j, temperature))
    loss_ref = jax.block_until_ready(nt_xent_loss_ref(z_i, z_j, temperature))
    assert jnp.isfinite(loss), "non-finite loss"
    assert jnp.allclose(loss, loss_ref, rtol=TOL, atol=TOL), (loss, loss_ref)

    # Check 2: odd shapes exercising the D-padding and row/column padding paths.
    k3, k4 = jax.random.split(k2)
    z_i2 = jax.random.normal(k3, (3, 40), dtype=jnp.float32)
    z_j2 = jax.random.normal(k4, (3, 40), dtype=jnp.float32)
    loss2 = jax.block_until_ready(nt_xent_loss(z_i2, z_j2, temperature))
    loss2_ref = jax.block_until_ready(nt_xent_loss_ref(z_i2, z_j2, temperature))
    assert jnp.isfinite(loss2), "non-finite loss (padded case)"
    assert jnp.allclose(loss2, loss2_ref, rtol=TOL, atol=TOL), (loss2, loss2_ref)

    # Check 3: small-block override exercising multiple row tiles, multiple key tiles
    # (streaming online-lse), gated diagonal masking (some tiles take no mask path at
    # all) and the padded final key tile.
    k5, k6 = jax.random.split(k4)
    z_i3 = jax.random.normal(k5, (80, 48), dtype=jnp.float32)
    z_j3 = jax.random.normal(k6, (80, 48), dtype=jnp.float32)
    loss3 = jax.block_until_ready(
        nt_xent_loss(z_i3, z_j3, temperature, block_q=32, block_k=128))
    loss3_ref = jax.block_until_ready(nt_xent_loss_ref(z_i3, z_j3, temperature))
    assert jnp.isfinite(loss3), "non-finite loss (multi-tile case)"
    assert jnp.allclose(loss3, loss3_ref, rtol=TOL, atol=TOL), (loss3, loss3_ref)

    print("KERNEL_OK")
</pallas_src>

<mosaic_0001>
module attributes {stable_mosaic.version = 11 : i64} {
  func.func @_nt_xent_lse_kernel(%arg0: i32, %arg1: i32, %arg2: memref<16x128xbf16, #tpu.memory_space<vmem>>, %arg3: memref<128x128xbf16, #tpu.memory_space<vmem>>, %arg4: memref<16x128xf32, #tpu.memory_space<vmem>>, %arg5: memref<16x128xf32, #tpu.memory_space<vmem>>, %arg6: memref<16x128xf32, #tpu.memory_space<vmem>>, %arg7: memref<16x128xf32, #tpu.memory_space<vmem>>) attributes {dimension_semantics = [#tpu.dimension_semantics<parallel>, #tpu.dimension_semantics<arbitrary>], iteration_bounds = array<i64: 1, 1>, scalar_prefetch = 0 : i64, scratch_operands = 3 : i64, tpu.core_type = #tpu.core_type<tc>, window_params = [{transform_indices = @transform_0, window_bounds = array<i64: 16, 128>}, {transform_indices = @transform_1, window_bounds = array<i64: 128, 128>}, {transform_indices = @transform_2, window_bounds = array<i64: 16, 128>}]} {
    %c0_i32 = arith.constant 0 : i32
    %0 = arith.cmpi eq, %arg1, %c0_i32 : i32
    %1 = arith.extui %0 : i1 to i32
    %c0_i32_0 = arith.constant 0 : i32
    %2 = arith.cmpi ne, %1, %c0_i32_0 : i32
    scf.if %2 {
      %cst_28 = arith.constant -1.000000e+30 : f32
      %44 = vector.broadcast %cst_28 : f32 to vector<16x128xf32>
      %c0_29 = arith.constant 0 : index
      %c0_30 = arith.constant 0 : index
      %45 = vector.load %arg5[%c0_29, %c0_30] : memref<16x128xf32, #tpu.memory_space<vmem>>, vector<16x128xf32>
      tpu.vector_store %arg5[%c0_29, %c0_30], %44 {strides = array<i32>} : memref<16x128xf32, #tpu.memory_space<vmem>>, vector<16x128xf32>,
      %cst_31 = arith.constant 0.000000e+00 : f32
      %46 = vector.broadcast %cst_31 : f32 to vector<16x128xf32>
      %c0_32 = arith.constant 0 : index
      %c0_33 = arith.constant 0 : index
      %47 = vector.load %arg6[%c0_32, %c0_33] : memref<16x128xf32, #tpu.memory_space<vmem>>, vector<16x128xf32>
      tpu.vector_store %arg6[%c0_32, %c0_33], %46 {strides = array<i32>} : memref<16x128xf32, #tpu.memory_space<vmem>>, vector<16x128xf32>,
    } else {
    }
    %c0 = arith.constant 0 : index
    %c0_1 = arith.constant 0 : index
    %3 = vector.load %arg2[%c0, %c0_1] : memref<16x128xbf16, #tpu.memory_space<vmem>>, vector<16x128xbf16>
    %c0_2 = arith.constant 0 : index
    %c0_3 = arith.constant 0 : index
    %4 = vector.load %arg3[%c0_2, %c0_3] : memref<128x128xbf16, #tpu.memory_space<vmem>>, vector<128x128xbf16>
    %cst = arith.constant dense<0.000000e+00> : vector<16x128xf32>
    %5 = tpu.matmul %3, %4, %cst {dimension_numbers = #tpu.dot_dimension_numbers<[1], [1], [0], [0], [0, 0, 1, 0], [], []>} : vector<16x128xbf16>, vector<128x128xbf16>, vector<16x128xf32> -> vector<16x128xf32>
    %c0_4 = arith.constant 0 : index
    %c0_5 = arith.constant 0 : index
    %6 = vector.load %arg7[%c0_4, %c0_5] : memref<16x128xf32, #tpu.memory_space<vmem>>, vector<16x128xf32>
    tpu.vector_store %arg7[%c0_4, %c0_5], %5 {strides = array<i32>} : memref<16x128xf32, #tpu.memory_space<vmem>>, vector<16x128xf32>,
    %c16_i32 = arith.constant 16 : i32
    %7 = arith.muli %arg0, %c16_i32 : i32
    %c1_i32 = arith.constant 1 : i32
    %8 = arith.addi %arg1, %c1_i32 : i32
    %c128_i32 = arith.constant 128 : i32
    %9 = arith.muli %8, %c128_i32 : i32
    %10 = arith.cmpi slt, %7, %9 : i32
    %c128_i32_6 = arith.constant 128 : i32
    %11 = arith.muli %arg1, %c128_i32_6 : i32
    %c1_i32_7 = arith.constant 1 : i32
    %12 = arith.addi %arg0, %c1_i32_7 : i32
    %c16_i32_8 = arith.constant 16 : i32
    %13 = arith.muli %12, %c16_i32_8 : i32
    %14 = arith.cmpi slt, %11, %13 : i32
    %15 = arith.andi %10, %14 : i1
    %c1_i32_9 = arith.constant 1 : i32
    %16 = arith.addi %arg1, %c1_i32_9 : i32
    %c128_i32_10 = arith.constant 128 : i32
    %17 = arith.muli %16, %c128_i32_10 : i32
    %c16_i32_11 = arith.constant 16 : i32
    %18 = arith.cmpi sgt, %17, %c16_i32_11 : i32
    %19 = arith.extui %15 : i1 to i32
    %c0_i32_12 = arith.constant 0 : i32
    %20 = arith.cmpi ne, %19, %c0_i32_12 : i32
    scf.if %20 {
      %c16_i32_28 = arith.constant 16 : i32
      %44 = arith.muli %arg0, %c16_i32_28 : i32
      %45 = tpu.iota {dimensions = array<i32: 0>} : vector<16x1xi32>
      %46 = vector.broadcast %44 : i32 to vector<16x1xi32>
      %47 = arith.addi %46, %45 : vector<16x1xi32>
      %c128_i32_29 = arith.constant 128 : i32
      %48 = arith.muli %arg1, %c128_i32_29 : i32
      %49 = tpu.iota {dimensions = array<i32: 1>} : vector<1x128xi32>
      %50 = vector.broadcast %48 : i32 to vector<1x128xi32>
      %51 = arith.addi %50, %49 : vector<1x128xi32>
      %52 = vector.broadcast %47 : vector<16x1xi32> to vector<16x128xi32>
      %53 = vector.broadcast %51 : vector<1x128xi32> to vector<16x128xi32>
      %54 = arith.cmpi eq, %52, %53 : vector<16x128xi32>
      %c0_30 = arith.constant 0 : index
      %c0_31 = arith.constant 0 : index
      %55 = vector.load %arg7[%c0_30, %c0_31] : memref<16x128xf32, #tpu.memory_space<vmem>>, vector<16x128xf32>
      %cst_32 = arith.constant -1.000000e+30 : f32
      %56 = vector.broadcast %cst_32 : f32 to vector<16x128xf32>
      %57 = arith.select %54, %56, %55 : vector<16x128xi1>, vector<16x128xf32>
      %c0_33 = arith.constant 0 : index
      %c0_34 = arith.constant 0 : index
      %58 = vector.load %arg7[%c0_33, %c0_34] : memref<16x128xf32, #tpu.memory_space<vmem>>, vector<16x128xf32>
      tpu.vector_store %arg7[%c0_33, %c0_34], %57 {strides = array<i32>} : memref<16x128xf32, #tpu.memory_space<vmem>>, vector<16x128xf32>,
    } else {
    }
    %21 = arith.extui %18 : i1 to i32
    %c0_i32_13 = arith.constant 0 : i32
    %22 = arith.cmpi ne, %21, %c0_i32_13 : i32
    scf.if %22 {
      %c128_i32_28 = arith.constant 128 : i32
      %44 = arith.muli %arg1, %c128_i32_28 : i32
      %45 = tpu.iota {dimensions = array<i32: 1>} : vector<1x128xi32>
      %46 = vector.broadcast %44 : i32 to vector<1x128xi32>
      %47 = arith.addi %46, %45 : vector<1x128xi32>
      %c16_i32_29 = arith.constant 16 : i32
      %48 = vector.broadcast %c16_i32_29 : i32 to vector<1x128xi32>
      %49 = arith.cmpi sge, %47, %48 : vector<1x128xi32>
      %c0_30 = arith.constant 0 : index
      %c0_31 = arith.constant 0 : index
      %50 = vector.load %arg7[%c0_30, %c0_31] : memref<16x128xf32, #tpu.memory_space<vmem>>, vector<16x128xf32>
      %cst_32 = arith.constant -1.000000e+30 : f32
      %51 = vector.shape_cast %49 : vector<1x128xi1> to vector<1x128xi1>
      %52 = vector.broadcast %51 : vector<1x128xi1> to vector<16x128xi1>
      %53 = vector.broadcast %cst_32 : f32 to vector<16x128xf32>
      %54 = arith.select %52, %53, %50 : vector<16x128xi1>, vector<16x128xf32>
      %c0_33 = arith.constant 0 : index
      %c0_34 = arith.constant 0 : index
      %55 = vector.load %arg7[%c0_33, %c0_34] : memref<16x128xf32, #tpu.memory_space<vmem>>, vector<16x128xf32>
      tpu.vector_store %arg7[%c0_33, %c0_34], %54 {strides = array<i32>} : memref<16x128xf32, #tpu.memory_space<vmem>>, vector<16x128xf32>,
    } else {
    }
    %c0_14 = arith.constant 0 : index
    %c0_15 = arith.constant 0 : index
    %23 = vector.load %arg7[%c0_14, %c0_15] : memref<16x128xf32, #tpu.memory_space<vmem>>, vector<16x128xf32>
    %c0_16 = arith.constant 0 : index
    %c0_17 = arith.constant 0 : index
    %24 = vector.load %arg5[%c0_16, %c0_17] : memref<16x128xf32, #tpu.memory_space<vmem>>, vector<16x128xf32>
    %c0_18 = arith.constant 0 : index
    %c0_19 = arith.constant 0 : index
    %25 = vector.load %arg6[%c0_18, %c0_19] : memref<16x128xf32, #tpu.memory_space<vmem>>, vector<16x128xf32>
    %cst_20 = arith.constant dense<0xFF800000> : vector<16xf32>
    %26 = vector.multi_reduction <maximumf>, %23, %cst_20 [1] : vector<16x128xf32> to vector<16xf32>
    %27 = vector.shape_cast %26 : vector<16xf32> to vector<16x1xf32>
    %28 = vector.broadcast %27 : vector<16x1xf32> to vector<16x128xf32>
    %29 = arith.maximumf %24, %28 : vector<16x128xf32>
    %30 = arith.subf %24, %29 : vector<16x128xf32>
    %31 = math.exp %30 : vector<16x128xf32>
    %32 = arith.subf %23, %29 : vector<16x128xf32>
    %33 = math.exp %32 : vector<16x128xf32>
    %c0_21 = arith.constant 0 : index
    %c0_22 = arith.constant 0 : index
    %34 = vector.load %arg5[%c0_21, %c0_22] : memref<16x128xf32, #tpu.memory_space<vmem>>, vector<16x128xf32>
    tpu.vector_store %arg5[%c0_21, %c0_22], %29 {strides = array<i32>} : memref<16x128xf32, #tpu.memory_space<vmem>>, vector<16x128xf32>,
    %cst_23 = arith.constant dense<0.000000e+00> : vector<16xf32>
    %35 = vector.multi_reduction <add>, %33, %cst_23 [1] : vector<16x128xf32> to vector<16xf32>
    %36 = vector.shape_cast %35 : vector<16xf32> to vector<16x1xf32>
    %37 = arith.mulf %31, %25 : vector<16x128xf32>
    %38 = vector.broadcast %36 : vector<16x1xf32> to vector<16x128xf32>
    %39 = arith.addf %38, %37 : vector<16x128xf32>
    %c0_24 = arith.constant 0 : index
    %c0_25 = arith.constant 0 : index
    %40 = vector.load %arg6[%c0_24, %c0_25] : memref<16x128xf32, #tpu.memory_space<vmem>>, vector<16x128xf32>
    tpu.vector_store %arg6[%c0_24, %c0_25], %39 {strides = array<i32>} : memref<16x128xf32, #tpu.memory_space<vmem>>, vector<16x128xf32>,
    %c0_i32_26 = arith.constant 0 : i32
    %41 = arith.cmpi eq, %arg1, %c0_i32_26 : i32
    %42 = arith.extui %41 : i1 to i32
    %c0_i32_27 = arith.constant 0 : i32
    %43 = arith.cmpi ne, %42, %c0_i32_27 : i32
    scf.if %43 {
      %c0_28 = arith.constant 0 : index
      %c0_29 = arith.constant 0 : index
      %44 = vector.load %arg5[%c0_28, %c0_29] : memref<16x128xf32, #tpu.memory_space<vmem>>, vector<16x128xf32>
      %c0_30 = arith.constant 0 : index
      %c0_31 = arith.constant 0 : index
      %45 = vector.load %arg6[%c0_30, %c0_31] : memref<16x128xf32, #tpu.memory_space<vmem>>, vector<16x128xf32>
      %46 = math.log %45 : vector<16x128xf32>
      %47 = arith.addf %44, %46 : vector<16x128xf32>
      %c0_32 = arith.constant 0 : index
      %c0_33 = arith.constant 0 : index
      %48 = vector.load %arg4[%c0_32, %c0_33] : memref<16x128xf32, #tpu.memory_space<vmem>>, vector<16x128xf32>
      tpu.vector_store %arg4[%c0_32, %c0_33], %47 {strides = array<i32>} : memref<16x128xf32, #tpu.memory_space<vmem>>, vector<16x128xf32>,
    } else {
    }
    return
  }
  func.func @transform_0(%arg0: i32, %arg1: i32) -> (i32, i32) {
    %c0_i32 = arith.constant 0 : i32
    %c0_i32_0 = arith.constant 0 : i32
    return %arg0, %c0_i32 : i32, i32
  }
  func.func @transform_1(%arg0: i32, %arg1: i32) -> (i32, i32) {
    %c0_i32 = arith.constant 0 : i32
    %c0_i32_0 = arith.constant 0 : i32
    return %arg1, %c0_i32 : i32, i32
  }
  func.func @transform_2(%arg0: i32, %arg1: i32) -> (i32, i32) {
    %c0_i32 = arith.constant 0 : i32
    %c0_i32_0 = arith.constant 0 : i32
    return %arg0, %c0_i32 : i32, i32
  }
}

</mosaic_0001>

<llo_original>
// kernel: tpu_custom_call.1
$region0: #{tpu_custom_call.1}
  #allocation0 [shape = 'u32[]', space=smem, size = 0x4, offset = 0x4, fixed_abs, tag = 'smem constant byte address 0x4 - core index']
  #allocation1 [shape = 'u32[144,128]{1,0:T(1,128)}', space=vmem, size = 0x12000, scoped, tag = 'internal scratch']
  #allocation2 [shape = 'f32[16,128]{1,0:T(8,128)}', space=vmem, size = 0x2000, scoped, tag = 'scratch operand']
  #allocation3 [shape = 'f32[16,128]{1,0:T(8,128)}', space=vmem, size = 0x2000, scoped, tag = 'scratch operand']
  #allocation4 [shape = 'f32[16,128]{1,0:T(8,128)}', space=vmem, size = 0x2000, scoped, tag = 'scratch operand']
  %s0 = inlined_call_operand.hbm [shape: bf16[16,128], index: 0, kind: input, shape index: {}]
  %s1 = inlined_call_operand.hbm [shape: bf16[128,128], index: 1, kind: input, shape index: {}]
  %s2 = inlined_call_operand.hbm [shape: f32[16,128], index: 2, kind: output, shape index: {}]
  %s3 = sld [smem:[#allocation0]]
  $region42: #{tpu_custom_call.1} parent=0
    _
  %s5 = ssub.s32 1, %s3
  %s6 = scalar_select 0, %s5, %s3
  $region1: #{tpu_custom_call.1} parent=0
    #allocation5 [shape = 'u8[4096]{0}', space=vmem, size = 0x1000, scoped, tag = 'input window, operand 0, single buffered']
    #allocation6 [shape = 's32[1]{0}', space=sflag, size = 0x4, scoped, tag = 'scoped memory for tpu_custom_call.1']
    #allocation7 [shape = 's32[1]{0}', space=sflag, size = 0x4, scoped, tag = 'scoped memory for tpu_custom_call.1']
    #allocation8 [shape = 'u8[32768]{0}', space=vmem, size = 0x8000, scoped, tag = 'input window, operand 1, single buffered']
    #allocation9 [shape = 's32[1]{0}', space=sflag, size = 0x4, scoped, tag = 'scoped memory for tpu_custom_call.1']
    #allocation10 [shape = 'u8[8192]{0}', space=vmem, size = 0x2000, scoped, tag = 'output window, operand 0, single buffered']
    %7 = vsyncpa [#allocation6], 0
    %8 = vsyncpa [#allocation9], 0
    %9 = vsyncpa [#allocation7], 0
    // Predicated region
    $region2: #{tpu_custom_call.1} parent=1 // pred_check
      _
    $region3: #{tpu_custom_call.1} parent=1 // pred_check_branch
      %11 = sbr.rel (0) target = $region5
    $region4: #{tpu_custom_call.1} parent=1 // pred_region
      %s13 = ssub.s32 128, 128
      %14 = vsyncadd [#allocation6], %s13
      %s15 = sshll.u32 [#allocation5], 4
      %s16 = int_to_ptr.vmem [resolvable:$true] %s15
      %21 = dma.hbm_to_vmem [thread:$0]  %s0, 128, %s16, [#allocation6], 64, 64, 4
    $region5: #{tpu_custom_call.1} parent=1 // pred_fallthru
      _
    // Predicated region
    $region6: #{tpu_custom_call.1} parent=1 // pred_check
      _
    $region7: #{tpu_custom_call.1} parent=1 // pred_check_branch
      %23 = sbr.rel (0) target = $region9
    $region8: #{tpu_custom_call.1} parent=1 // pred_region
      %s25 = ssub.s32 1024, 1024
      %26 = vsyncadd [#allocation9], %s25
      %s27 = sshll.u32 [#allocation8], 4
      %s28 = int_to_ptr.vmem [resolvable:$true] %s27
      %33 = dma.hbm_to_vmem [thread:$0]  %s1, 1024, %s28, [#allocation9], 64, 64, 4
    $region9: #{tpu_custom_call.1} parent=1 // pred_fallthru
      _
    // Predicated region
    $region10: #{tpu_custom_call.1} parent=1 // pred_check
      _
    $region11: #{tpu_custom_call.1} parent=1 // pred_check_branch
      %35 = sbr.rel (0) target = $region13
    $region12: #{tpu_custom_call.1} parent=1 // pred_region
      %36 = dma.done [#allocation6], 128
    $region13: #{tpu_custom_call.1} parent=1 // pred_fallthru
      _
    // Predicated region
    $region14: #{tpu_custom_call.1} parent=1 // pred_check
      _
    $region15: #{tpu_custom_call.1} parent=1 // pred_check_branch
      %38 = sbr.rel (0) target = $region17
    $region16: #{tpu_custom_call.1} parent=1 // pred_region
      %39 = dma.done [#allocation9], 1024
    $region17: #{tpu_custom_call.1} parent=1 // pred_fallthru
      _
    %p41 = scmp.eq.s32.totalorder 0, 0
    // Predicated region
    $region18: #{tpu_custom_call.1} parent=1 // pred_check
      %p42 = pneg %p41
    $region19: #{tpu_custom_call.1} parent=1 // pred_check_branch
      %44 = sbr.rel (%p42) target = $region21
    $region20: #{tpu_custom_call.1} parent=1 // pred_region
      %45 = vst [vmem:[#allocation2] sm:$0xff] -1e+30
      %46 = vst [vmem:[#allocation2 + $0x8] sm:$0xff] -1e+30
      %47 = vst [vmem:[#allocation3] sm:$0xff] 0.0
      %48 = vst [vmem:[#allocation3 + $0x8] sm:$0xff] 0.0
    $region21: #{tpu_custom_call.1} parent=1 // pred_fallthru
      _
    %v49 = vld [vmem:[#allocation5] sm:$0xf]
    %v50 = vld [vmem:[#allocation5 + $0x4] sm:$0xf]
    %v51 = vld [vmem:[#allocation8] sm:$0xf]
    %v52 = vld [vmem:[#allocation8 + $0x4] sm:$0xf]
    %v53 = vld [vmem:[#allocation8 + $0x8] sm:$0xf]
    %v54 = vld [vmem:[#allocation8 + $0xc] sm:$0xf]
    %v55 = vld [vmem:[#allocation8 + $0x10] sm:$0xf]
    %v56 = vld [vmem:[#allocation8 + $0x14] sm:$0xf]
    %v57 = vld [vmem:[#allocation8 + $0x18] sm:$0xf]
    %v58 = vld [vmem:[#allocation8 + $0x1c] sm:$0xf]
    %v59 = vld [vmem:[#allocation8 + $0x20] sm:$0xf]
    %v60 = vld [vmem:[#allocation8 + $0x24] sm:$0xf]
    %v61 = vld [vmem:[#allocation8 + $0x28] sm:$0xf]
    %v62 = vld [vmem:[#allocation8 + $0x2c] sm:$0xf]
    %v63 = vld [vmem:[#allocation8 + $0x30] sm:$0xf]
    %v64 = vld [vmem:[#allocation8 + $0x34] sm:$0xf]
    %v65 = vld [vmem:[#allocation8 + $0x38] sm:$0xf]
    %v66 = vld [vmem:[#allocation8 + $0x3c] sm:$0xf]
    %v69 = vunpack.c.l.b16 %v49
    %v70 = vunpack.c.l.b16 %v50
    %v71 = vpack.c.b16 %v70, %v69
    %v89 = vunpack.c.l.b16 %v51
    %v90 = vunpack.c.l.b16 %v52
    %v91 = vunpack.c.l.b16 %v53
    %v92 = vunpack.c.l.b16 %v54
    %v93 = vunpack.c.l.b16 %v55
    %v94 = vunpack.c.l.b16 %v56
    %v95 = vunpack.c.l.b16 %v57
    %v96 = vunpack.c.l.b16 %v58
    %v97 = vunpack.c.l.b16 %v59
    %v98 = vunpack.c.l.b16 %v60
    %v99 = vunpack.c.l.b16 %v61
    %v100 = vunpack.c.l.b16 %v62
    %v101 = vunpack.c.l.b16 %v63
    %v102 = vunpack.c.l.b16 %v64
    %v103 = vunpack.c.l.b16 %v65
    %v104 = vunpack.c.l.b16 %v66
    %v105 = vpack.c.b16 %v90, %v89
    %v106 = vpack.c.b16 %v92, %v91
    %v107 = vpack.c.b16 %v94, %v93
    %v108 = vpack.c.b16 %v96, %v95
    %v109 = vpack.c.b16 %v98, %v97
    %v110 = vpack.c.b16 %v100, %v99
    %v111 = vpack.c.b16 %v102, %v101
    %v112 = vpack.c.b16 %v104, %v103
    %121 = vmatprep.subr.bf16.mxu0 0
    %122 = vmatpush1.bf16.xpose.msra.mxu0 %v112
    %123 = vmatprep.subr.bf16.mxu0 0
    %124 = vmatpush1.bf16.xpose.msra.mxu0 %v111
    %125 = vmatprep.subr.bf16.mxu0 0
    %126 = vmatpush1.bf16.xpose.msra.mxu0 %v110
    %127 = vmatprep.subr.bf16.mxu0 0
    %128 = vmatpush1.bf16.xpose.msra.mxu0 %v109
    %129 = vmatprep.subr.bf16.mxu0 0
    %130 = vmatpush1.bf16.xpose.msra.mxu0 %v108
    %131 = vmatprep.subr.bf16.mxu0 0
    %132 = vmatpush1.bf16.xpose.msra.mxu0 %v107
    %133 = vmatprep.subr.bf16.mxu0 0
    %134 = vmatpush1.bf16.xpose.msra.mxu0 %v106
    %135 = vmatprep.subr.bf16.mxu0 0
    %136 = vmatpush1.bf16.xpose.msra.mxu0 %v105
    %137 = vmatprep.subr.bf16.mxu0 0
    %138 = vmatpush2.bf16.xpose.msra.mxu0 0
    %139 = vmatprep.subr.bf16.mxu0 0
    %140 = vmatpush2.bf16.xpose.msra.mxu0 0
    %141 = vmatprep.subr.bf16.mxu0 0
    %142 = vmatpush2.bf16.xpose.msra.mxu0 0
    %143 = vmatprep.subr.bf16.mxu0 0
    %144 = vmatpush2.bf16.xpose.msra.mxu0 0
    %145 = vmatprep.subr.bf16.mxu0 0
    %146 = vmatpush2.bf16.xpose.msra.mxu0 0
    %147 = vmatprep.subr.bf16.mxu0 0
    %148 = vmatpush2.bf16.xpose.msra.mxu0 0
    %149 = vmatprep.subr.bf16.mxu0 0
    %150 = vmatpush2.bf16.xpose.msra.mxu0 0
    %151 = vmatprep.subr.bf16.mxu0 0
    %152 = vmatpush2.bf16.xpose.msra.mxu0 0
    %153 = vmatprep.mubr.bf16.mxu0 0
    %154 = vmatmul.mubr.bf16.gmra.mxu0 %v71
    %v155 = vpop.f32.mrf.mxu0
    %v156 = vadd.f32 0.0, %v155
    %v157 = vpop.f32.mrf.mxu0
    %v158 = vpop.f32.mrf.mxu0
    %v159 = vadd.f32 0.0, %v158
    %v160 = vpop.f32.mrf.mxu0
    %161 = vdwg.mxu0
    %162 = vst [vmem:[#allocation4] sm:$0xff] %v156
    %163 = vst [vmem:[#allocation4 + $0x8] sm:$0xff] %v159
    %s164 = smul.u32 0, 16
    %s165 = sadd.s32 0, 1
    %s166 = smul.u32 %s165, 128
    %p167 = scmp.lt.s32.totalorder %s164, %s166
    %s168 = smul.u32 0, 128
    %s169 = sadd.s32 0, 1
    %s170 = smul.u32 %s169, 16
    %p171 = scmp.lt.s32.totalorder %s168, %s170
    %p172 = pnand %p167, %p171
    %p173 = pneg %p172
    %p174 = scmp.gt.s32.totalorder %s166, 16
    // Predicated region
    $region22: #{tpu_custom_call.1} parent=1 // pred_check
      _
    $region23: #{tpu_custom_call.1} parent=1 // pred_check_branch
      %176 = sbr.rel (%p172) target = $region25
    $region24: #{tpu_custom_call.1} parent=1 // pred_region
      %v177 = vlaneseq
      %v178 = vshrl.u32 %v177, 7
      %v179 = vadd.s32 %v178, 8
      %v180 = vstv %s164
      %v181 = vadd.s32 %v180, %v178
      %v182 = vadd.s32 %v180, %v179
      %v183 = vlaneseq
      %v184 = vand.u32 %v183, 127
      %v185 = vstv %s168
      %v186 = vadd.s32 %v185, %v184
      %vm187 = vcmp.eq.s32.totalorder %v181, %v186
      %vm188 = vcmp.eq.s32.totalorder %v182, %v186
      %v189 = vld [vmem:[#allocation4] sm:$0xff]
      %v190 = vld [vmem:[#allocation4 + $0x8] sm:$0xff]
      %v191 = vsel %vm187, -1e+30, %v189
      %v192 = vsel %vm188, -1e+30, %v190
      %193 = vst [vmem:[#allocation4] sm:$0xff] %v191
      %194 = vst [vmem:[#allocation4 + $0x8] sm:$0xff] %v192
    $region25: #{tpu_custom_call.1} parent=1 // pred_fallthru
      _
    // Predicated region
    $region26: #{tpu_custom_call.1} parent=1 // pred_check
      %p195 = pneg %p174
    $region27: #{tpu_custom_call.1} parent=1 // pred_check_branch
      %197 = sbr.rel (%p195) target = $region29
    $region28: #{tpu_custom_call.1} parent=1 // pred_region
      %v198 = vlaneseq
      %v199 = vand.u32 %v198, 127
      %v200 = vstv %s168
      %v201 = vadd.s32 %v200, %v199
      %vm202 = vcmp.ge.s32.totalorder %v201, 16
      %v203 = vld [vmem:[#allocation4] sm:$0xff]
      %v204 = vld [vmem:[#allocation4 + $0x8] sm:$0xff]
      %v205 = vsel %vm202, 1, 0
      %vm206 = vcmp.eq.s32.totalorder %v205, 1
      %v207 = vsel %vm206, -1e+30, %v203
      %v208 = vsel %vm206, -1e+30, %v204
      %209 = vst [vmem:[#allocation4] sm:$0xff] %v207
      %210 = vst [vmem:[#allocation4 + $0x8] sm:$0xff] %v208
    $region29: #{tpu_custom_call.1} parent=1 // pred_fallthru
      _
    %v211 = vld [vmem:[#allocation4] sm:$0xff]
    %v212 = vld [vmem:[#allocation4 + $0x8] sm:$0xff]
    %v213 = vld [vmem:[#allocation2] sm:$0xff]
    %v214 = vld [vmem:[#allocation2 + $0x8] sm:$0xff]
    %v215 = vld [vmem:[#allocation3] sm:$0xff]
    %v216 = vld [vmem:[#allocation3 + $0x8] sm:$0xff]
    %217 = vmax.xlane.f32.xlu0 %v211
    %v218 = vpop.xlane.xlu0 %217
    %219 = vmax.xlane.f32.xlu0 %v212
    %v220 = vpop.xlane.xlu0 %219
    %v221 = vmax.f32 %v213, %v218
    %v222 = vmax.f32 %v214, %v220
    %v223 = vsub.f32 %v213, %v221
    %v224 = vsub.f32 %v214, %v222
    %v225 = vmul.f32 %v223, 1.442695
    %v226 = vpow.pop %v225
    %v227 = vmul.f32 %v224, 1.442695
    %v228 = vpow.pop %v227
    %v229 = vsub.f32 %v211, %v221
    %v230 = vsub.f32 %v212, %v222
    %v231 = vmul.f32 %v229, 1.442695
    %v232 = vpow.pop %v231
    %v233 = vmul.f32 %v230, 1.442695
    %v234 = vpow.pop %v233
    %235 = vst [vmem:[#allocation2] sm:$0xff] %v221
    %236 = vst [vmem:[#allocation2 + $0x8] sm:$0xff] %v222
    %237 = vadd.xlane.f32.xlu0 %v232
    %v238 = vpop.xlane.xlu0 %237
    %239 = vadd.xlane.f32.xlu0 %v234
    %v240 = vpop.xlane.xlu0 %239
    %v241 = vmul.f32 %v226, %v215
    %v242 = vmul.f32 %v228, %v216
    %v243 = vadd.f32 %v238, %v241
    %v244 = vadd.f32 %v240, %v242
    %245 = vst [vmem:[#allocation3] sm:$0xff] %v243
    %246 = vst [vmem:[#allocation3 + $0x8] sm:$0xff] %v244
    // Predicated region
    $region30: #{tpu_custom_call.1} parent=1 // pred_check
      %p247 = pneg %p41
    $region31: #{tpu_custom_call.1} parent=1 // pred_check_branch
      %249 = sbr.rel (%p247) target = $region33
    $region32: #{tpu_custom_call.1} parent=1 // pred_region
      %v250 = vld [vmem:[#allocation2] sm:$0xff]
      %v251 = vld [vmem:[#allocation2 + $0x8] sm:$0xff]
      %v252 = vld [vmem:[#allocation3] sm:$0xff]
      %v253 = vld [vmem:[#allocation3 + $0x8] sm:$0xff]
      %v254 = vlog2.pop %v252
      %v255 = vmul.f32 %v254, 0.6931472
      %v256 = vlog2.pop %v253
      %v257 = vmul.f32 %v256, 0.6931472
      %v258 = vadd.f32 %v250, %v255
      %v259 = vadd.f32 %v251, %v257
      %260 = vst [vmem:[#allocation10] sm:$0xff] %v258
      %261 = vst [vmem:[#allocation10 + $0x8] sm:$0xff] %v259
    $region33: #{tpu_custom_call.1} parent=1 // pred_fallthru
      _
    // Predicated region
    $region34: #{tpu_custom_call.1} parent=1 // pred_check
      _
    $region35: #{tpu_custom_call.1} parent=1 // pred_check_branch
      %263 = sbr.rel (0) target = $region37
    $region36: #{tpu_custom_call.1} parent=1 // pred_region
      %s265 = ssub.s32 256, 256
      %266 = vsyncadd [#allocation7], %s265
      %s267 = sshll.u32 [#allocation10], 4
      %s268 = int_to_ptr.vmem [resolvable:$true] %s267
      %273 = dma.vmem_to_hbm [thread:$0]  %s268, 256, %s2, [#allocation7], 128, 128, 8
    $region37: #{tpu_custom_call.1} parent=1 // pred_fallthru
      _
    // Predicated region
    $region38: #{tpu_custom_call.1} parent=1 // pred_check
      _
    $region39: #{tpu_custom_call.1} parent=1 // pred_check_branch
      %275 = sbr.rel (0) target = $region41
    $region40: #{tpu_custom_call.1} parent=1 // pred_region
      %276 = dma.done [#allocation7], 256
    $region41: #{tpu_custom_call.1} parent=1 // pred_fallthru
      _
    %277 = vsyncpa [#allocation6], 1
    %278 = vsyncpa [#allocation9], 1
    %279 = vsyncpa [#allocation7], 1

</llo_original>
